<compile_context>
chip_gen: v7x
topology: tpu7x:2x2x1
jax: 0.10.0
libtpu: 0.0.40
codegen_flags: <defaults>
</compile_context>

<pallas_src>
import functools

import jax
import jax.numpy as jnp
import numpy as np
from jax import lax
from jax.experimental import pallas as pl
from jax.experimental.pallas import tpu as pltpu

CONFIG = {
    "areas": [32.0 ** 2, 64.0 ** 2, 128.0 ** 2],
    "ratios": [0.5, 1.0, 2.0],
    "stride_len": 16.0,
}

_SUB_H = 8  # rows per in-kernel sub-slab (one sublane tile) -> bounded temporaries


def get_anchor_dims(areas, ratios):
    """Deterministic 'parameter' setup (mirrors __init__): (A, 2) = (w, h)."""
    dims = []
    for area in areas:
        for ratio in ratios:
            w = (area / ratio) ** 0.5
            h = (area * ratio) ** 0.5
            dims.append((w, h))
    return np.asarray(dims, dtype=np.float32)


def _round_up(x, m):
    return ((x + m - 1) // m) * m


def _build_lane_pattern(ft_w, anchor_dims, stride):
    """Static per-lane config, channel interleaved: lane = (j*A + a)*4 + c.

    row 0: row-invariant value (cx at c==0, 0 at c==1, w at c==2, h at c==3)
    row 1: 1.0 where c==1 (the cy channel), else 0.0
    Built with NumPy at trace time (pure config, no XLA graph).
    """
    num_anchors = anchor_dims.shape[0]
    pat = np.zeros((2, ft_w * num_anchors * 4), dtype=np.float32)
    base = pat[0].reshape(ft_w, num_anchors, 4)
    mask = pat[1].reshape(ft_w, num_anchors, 4)
    cx = (np.arange(ft_w, dtype=np.float32) + 0.5) * stride
    base[:, :, 0] = cx[:, None]
    base[:, :, 2] = anchor_dims[None, :, 0]
    base[:, :, 3] = anchor_dims[None, :, 1]
    mask[:, :, 1] = 1.0
    return pat


def _choose_tiling(ft_h, lanes, target_block_bytes=4 << 20):
    """Balanced row tiling: multiples of 8, minimal padding, ~target-sized blocks."""
    row_bytes = lanes * 4
    max_rows = max(_SUB_H, (target_block_bytes // row_bytes) // _SUB_H * _SUB_H)
    n_tiles = pl.cdiv(ft_h, max_rows)
    if n_tiles == 1 and ft_h >= 2 * _SUB_H:
        n_tiles = 2  # let v7x's second TensorCore take a step when rows allow
    tile_h = _round_up(pl.cdiv(ft_h, n_tiles), _SUB_H)
    h_pad = n_tiles * tile_h
    return n_tiles, tile_h, h_pad


def _anchor_kernel(pattern_ref, out_ref, *, stride):
    """Stream anchors as (tile_h, W*A*4) slabs; one FMA per element.

    pattern_ref: VMEM (2, W*A*4) f32 -- [static cx/0/w/h values, cy-channel mask]
    out_ref    : VMEM (tile_h, W*A*4) f32 -- lane = (j*A + a)*4 + c
    """
    tile_h = out_ref.shape[0]
    row0 = pl.program_id(0) * tile_h
    base = pattern_ref[0:1, :]      # (1, lanes) row-invariant values
    cy_mask = pattern_ref[1:2, :]   # (1, lanes) 1.0 on the cy channel lanes

    def body(s, carry):
        r = pl.multiple_of(s * _SUB_H, _SUB_H)
        rows = lax.broadcasted_iota(jnp.int32, (_SUB_H, 1), 0) + (row0 + r)
        cy = (rows.astype(jnp.float32) + 0.5) * stride             # (_SUB_H, 1)
        out_ref[pl.ds(r, _SUB_H), :] = base + cy_mask * cy          # (_SUB_H, lanes)
        return carry

    lax.fori_loop(0, tile_h // _SUB_H, body, 0)


def anchor_generator_forward(ft_h, ft_w, anchor_dims, stride):
    """Equivalent of AnchorGenerator.forward(ft_h, ft_w) -> (H*W*A, 4)."""
    ft_h, ft_w = int(ft_h), int(ft_w)
    stride = float(stride)
    anchor_dims = np.asarray(anchor_dims, dtype=np.float32)
    num_anchors = anchor_dims.shape[0]
    lanes = ft_w * num_anchors * 4  # lane axis: (j, a, c) flattened, c fastest

    pattern = jnp.asarray(_build_lane_pattern(ft_w, anchor_dims, stride))

    n_tiles, tile_h, h_pad = _choose_tiling(ft_h, lanes)
    block_bytes = tile_h * lanes * 4
    # Double-buffered output block + pattern + in-kernel sub-slab temps + headroom.
    vmem_limit = int(min(2 * block_bytes + (8 << 20), 48 << 20))

    out = pl.pallas_call(
        functools.partial(_anchor_kernel, stride=stride),
        out_shape=jax.ShapeDtypeStruct((h_pad, lanes), jnp.float32),
        grid=(n_tiles,),
        in_specs=[pl.BlockSpec((2, lanes), lambda t: (0, 0))],
        out_specs=pl.BlockSpec((tile_h, lanes), lambda t: (t, 0)),
        compiler_params=pltpu.CompilerParams(
            dimension_semantics=("parallel",),
            vmem_limit_bytes=vmem_limit,
        ),
    )(pattern)

    # Row padding (if any) is sliced off BEFORE the flatten; the reshape itself
    # is a pure row-major view of the channel-interleaved layout (no transpose).
    if h_pad != ft_h:
        out = out[:ft_h]
    return out.reshape(ft_h * ft_w * num_anchors, 4)


def _reference_anchors(ft_h, ft_w, dims, stride):
    """Pure NumPy reference of the assumed semantics."""
    dims = np.asarray(dims)
    num_anchors = dims.shape[0]
    out = np.zeros((ft_h * ft_w * num_anchors, 4), np.float32)
    idx = 0
    for i in range(ft_h):
        for jj in range(ft_w):
            cx = (jj + 0.5) * stride
            cy = (i + 0.5) * stride
            for a in range(num_anchors):
                out[idx] = [cx, cy, dims[a, 0], dims[a, 1]]
                idx += 1
    return out


if __name__ == "__main__":
    # The module's forward takes only (ft_h, ft_w) scalars; the PRNG key is kept
    # for the deterministic-input convention but no random tensors are needed.
    _ = jax.random.PRNGKey(0)

    anchor_dims = get_anchor_dims(CONFIG["areas"], CONFIG["ratios"])  # (9, 2)

    # Case 1: small aligned feature map (stride-16 level of a 128x256 image).
    ft_h, ft_w = 8, 16
    anchors = anchor_generator_forward(ft_h, ft_w, anchor_dims, CONFIG["stride_len"])
    anchors = jax.block_until_ready(anchors)
    ref = _reference_anchors(ft_h, ft_w, anchor_dims, CONFIG["stride_len"])
    assert anchors.shape == (ft_h * ft_w * anchor_dims.shape[0], 4), anchors.shape
    np.testing.assert_allclose(np.asarray(anchors), ref, rtol=1e-6, atol=1e-6)

    # Case 2: awkward (non-multiple-of-8) height exercising multi-tile + row slice.
    ft_h2, ft_w2 = 25, 20
    anchors2 = anchor_generator_forward(ft_h2, ft_w2, anchor_dims, CONFIG["stride_len"])
    anchors2 = jax.block_until_ready(anchors2)
    ref2 = _reference_anchors(ft_h2, ft_w2, anchor_dims, CONFIG["stride_len"])
    assert anchors2.shape == (ft_h2 * ft_w2 * anchor_dims.shape[0], 4), anchors2.shape
    np.testing.assert_allclose(np.asarray(anchors2), ref2, rtol=1e-6, atol=1e-6)

    print("KERNEL_OK")
</pallas_src>

<mosaic_0001>
module attributes {stable_mosaic.version = 11 : i64} {
  func.func @_anchor_kernel(%arg0: i32, %arg1: memref<2x576xf32, #tpu.memory_space<vmem>>, %arg2: memref<8x576xf32, #tpu.memory_space<vmem>>) attributes {dimension_semantics = [#tpu.dimension_semantics<parallel>], iteration_bounds = array<i64: 1>, scalar_prefetch = 0 : i64, scratch_operands = 0 : i64, tpu.core_type = #tpu.core_type<tc>, window_params = [{pipeline_mode = #tpu.pipeline_mode<synchronous>, transform_indices = @transform_0, window_bounds = array<i64: 2, 576>}, {transform_indices = @transform_1, window_bounds = array<i64: 8, 576>}]} {
    %c8_i32 = arith.constant 8 : i32
    %0 = arith.muli %arg0, %c8_i32 : i32
    %c0 = arith.constant 0 : index
    %c0_0 = arith.constant 0 : index
    %1 = vector.load %arg1[%c0, %c0_0] : memref<2x576xf32, #tpu.memory_space<vmem>>, vector<1x576xf32>
    %c1 = arith.constant 1 : index
    %c0_1 = arith.constant 0 : index
    %2 = vector.load %arg1[%c1, %c0_1] : memref<2x576xf32, #tpu.memory_space<vmem>>, vector<1x576xf32>
    %c0_i32 = arith.constant 0 : i32
    %c8_i32_2 = arith.constant 8 : i32
    %3 = arith.muli %c0_i32, %c8_i32_2 : i32
    %4 = tpu.assume_multiple %3, 8 : i32
    %5 = tpu.iota {dimensions = array<i32: 0>} : vector<8x1xi32>
    %6 = arith.addi %0, %4 : i32
    %7 = vector.broadcast %6 : i32 to vector<8x1xi32>
    %8 = arith.addi %5, %7 : vector<8x1xi32>
    %9 = arith.sitofp %8 : vector<8x1xi32> to vector<8x1xf32>
    %cst = arith.constant 5.000000e-01 : f32
    %10 = vector.broadcast %cst : f32 to vector<8x1xf32>
    %11 = arith.addf %9, %10 : vector<8x1xf32>
    %cst_3 = arith.constant 1.600000e+01 : f32
    %12 = vector.broadcast %cst_3 : f32 to vector<8x1xf32>
    %13 = arith.mulf %11, %12 : vector<8x1xf32>
    %14 = vector.broadcast %2 : vector<1x576xf32> to vector<8x576xf32>
    %15 = vector.broadcast %13 : vector<8x1xf32> to vector<8x576xf32>
    %16 = arith.mulf %14, %15 : vector<8x576xf32>
    %17 = vector.broadcast %1 : vector<1x576xf32> to vector<8x576xf32>
    %18 = arith.addf %17, %16 : vector<8x576xf32>
    %19 = arith.index_cast %4 : i32 to index
    %c0_4 = arith.constant 0 : index
    %20 = vector.load %arg2[%19, %c0_4] : memref<8x576xf32, #tpu.memory_space<vmem>>, vector<8x576xf32>
    tpu.vector_store %arg2[%19, %c0_4], %18 {strides = array<i32>} : memref<8x576xf32, #tpu.memory_space<vmem>>, vector<8x576xf32>,
    %c1_i32 = arith.constant 1 : i32
    return
  }
  func.func @transform_0(%arg0: i32) -> (i32, i32) {
    %c0_i32 = arith.constant 0 : i32
    %c0_i32_0 = arith.constant 0 : i32
    %c0_i32_1 = arith.constant 0 : i32
    return %c0_i32, %c0_i32_0 : i32, i32
  }
  func.func @transform_1(%arg0: i32) -> (i32, i32) {
    %c0_i32 = arith.constant 0 : i32
    %c0_i32_0 = arith.constant 0 : i32
    return %arg0, %c0_i32 : i32, i32
  }
}

</mosaic_0001>

<llo_original>
// kernel: tpu_custom_call.1
$region0: #{tpu_custom_call.1}
  #allocation0 [shape = 'u32[]', space=smem, size = 0x4, offset = 0x4, fixed_abs, tag = 'smem constant byte address 0x4 - core index']
  #allocation1 [shape = 'u32[144,128]{1,0:T(1,128)}', space=vmem, size = 0x12000, scoped, tag = 'internal scratch']
  %s0 = inlined_call_operand.hbm [shape: f32[2,576], index: 0, kind: input, shape index: {}]
  %s1 = inlined_call_operand.hbm [shape: f32[8,576], index: 1, kind: output, shape index: {}]
  %s2 = sld [smem:[#allocation0]]
  $region18: #{tpu_custom_call.1} parent=0
    _
  %s4 = ssub.s32 1, %s2
  %s5 = scalar_select 0, %s4, %s2
  $region1: #{tpu_custom_call.1} parent=0
    #allocation2 [shape = 'u8[5120]{0}', space=vmem, size = 0x1400, scoped, tag = 'input window, operand 0, single buffered']
    #allocation3 [shape = 's32[1]{0}', space=sflag, size = 0x4, scoped, tag = 'scoped memory for tpu_custom_call.1']
    #allocation4 [shape = 's32[1]{0}', space=sflag, size = 0x4, scoped, tag = 'scoped memory for tpu_custom_call.1']
    #allocation5 [shape = 'u8[20480]{0}', space=vmem, size = 0x5000, scoped, tag = 'output window, operand 0, single buffered']
    %6 = vsyncpa [#allocation3], 0
    %7 = vsyncpa [#allocation4], 0
    // Predicated region
    $region2: #{tpu_custom_call.1} parent=1 // pred_check
      _
    $region3: #{tpu_custom_call.1} parent=1 // pred_check_branch
      %9 = sbr.rel (0) target = $region5
    $region4: #{tpu_custom_call.1} parent=1 // pred_region
      %s11 = ssub.s32 160, 160
      %12 = vsyncadd [#allocation3], %s11
      %s14 = sshll.u32 [#allocation2], 4
      %s15 = int_to_ptr.vmem [resolvable:$true] %s14
      %17 = dma.hbm_to_vmem [thread:$0]  %s0, 160, %s15, [#allocation3]
    $region5: #{tpu_custom_call.1} parent=1 // pred_fallthru
      _
    // Predicated region
    $region6: #{tpu_custom_call.1} parent=1 // pred_check
      _
    $region7: #{tpu_custom_call.1} parent=1 // pred_check_branch
      %19 = sbr.rel (0) target = $region9
    $region8: #{tpu_custom_call.1} parent=1 // pred_region
      %20 = dma.done [#allocation3], 160
    $region9: #{tpu_custom_call.1} parent=1 // pred_fallthru
      _
    %s21 = smul.u32 0, 8
    %v22 = vld [vmem:[#allocation2] ss:$2 sm:$0x1f]
    %s23 = scalar_lea.vmem [#allocation2], 1
    %v24 = vld [vmem:[%s23] ss:$2 sm:$0x1f]
    %v25 = vlaneseq
    %v26 = vshrl.u32 %v25, 7
    %s27 = sadd.s32 %s21, 0
    %v28 = vstv %s27
    %v29 = vadd.s32 %v26, %v28
    %v30 = vcvt.s32.f32 %v29
    %v31 = vadd.f32 %v30, 0.5
    %v32 = vmul.f32 %v31, 16.0
    %v34 = vlaneseq
    %v35 = vshrl.u32 %v34, 7
    %v36 = vsub.s32 0, %v35
    %v37 = vrot.slane %v24, %v36
    %v38 = vlaneseq
    %v39 = vshrl.u32 %v38, 7
    %v40 = vsub.s32 1, %v39
    %v41 = vrot.slane %v24, %v40
    %v42 = vlaneseq
    %v43 = vshrl.u32 %v42, 7
    %v44 = vsub.s32 2, %v43
    %v45 = vrot.slane %v24, %v44
    %v46 = vlaneseq
    %v47 = vshrl.u32 %v46, 7
    %v48 = vsub.s32 3, %v47
    %v49 = vrot.slane %v24, %v48
    %v50 = vlaneseq
    %v51 = vshrl.u32 %v50, 7
    %v52 = vsub.s32 4, %v51
    %v53 = vrot.slane %v24, %v52
    %v59 = vmul.f32 %v37, %v32
    %v60 = vmul.f32 %v41, %v32
    %v61 = vmul.f32 %v45, %v32
    %v62 = vmul.f32 %v49, %v32
    %v63 = vmul.f32 %v53, %v32
    %v65 = vlaneseq
    %v66 = vshrl.u32 %v65, 7
    %v67 = vsub.s32 0, %v66
    %v68 = vrot.slane %v22, %v67
    %v69 = vlaneseq
    %v70 = vshrl.u32 %v69, 7
    %v71 = vsub.s32 1, %v70
    %v72 = vrot.slane %v22, %v71
    %v73 = vlaneseq
    %v74 = vshrl.u32 %v73, 7
    %v75 = vsub.s32 2, %v74
    %v76 = vrot.slane %v22, %v75
    %v77 = vlaneseq
    %v78 = vshrl.u32 %v77, 7
    %v79 = vsub.s32 3, %v78
    %v80 = vrot.slane %v22, %v79
    %v81 = vlaneseq
    %v82 = vshrl.u32 %v81, 7
    %v83 = vsub.s32 4, %v82
    %v84 = vrot.slane %v22, %v83
    %v90 = vadd.f32 %v68, %v59
    %v91 = vadd.f32 %v72, %v60
    %v92 = vadd.f32 %v76, %v61
    %v93 = vadd.f32 %v80, %v62
    %v94 = vadd.f32 %v84, %v63
    %s95 = smul.u32 0, 5
    %s96 = smul.addr %s95, 8
    %s97 = scalar_lea.vmem [#allocation5], %s96
    %98 = vst [vmem:[%s97] sm:$0xff] %v90
    %99 = vst [vmem:[%s97 + $0x8] sm:$0xff] %v91
    %100 = vst [vmem:[%s97 + $0x10] sm:$0xff] %v92
    %101 = vst [vmem:[%s97 + $0x18] sm:$0xff] %v93
    %vm102 = vcmask 523264
    %103 = vst.msk [vmem:[%s97 + $0x20] sm:$0xff] %vm102, %v94
    // Predicated region
    $region10: #{tpu_custom_call.1} parent=1 // pred_check
      _
    $region11: #{tpu_custom_call.1} parent=1 // pred_check_branch
      %105 = sbr.rel (0) target = $region13
    $region12: #{tpu_custom_call.1} parent=1 // pred_region
      %s107 = ssub.s32 640, 640
      %108 = vsyncadd [#allocation4], %s107
      %s110 = sshll.u32 [#allocation5], 4
      %s111 = int_to_ptr.vmem [resolvable:$true] %s110
      %113 = dma.vmem_to_hbm [thread:$0]  %s111, 640, %s1, [#allocation4]
    $region13: #{tpu_custom_call.1} parent=1 // pred_fallthru
      _
    // Predicated region
    $region14: #{tpu_custom_call.1} parent=1 // pred_check
      _
    $region15: #{tpu_custom_call.1} parent=1 // pred_check_branch
      %115 = sbr.rel (0) target = $region17
    $region16: #{tpu_custom_call.1} parent=1 // pred_region
      %116 = dma.done [#allocation4], 640
    $region17: #{tpu_custom_call.1} parent=1 // pred_fallthru
      _
    %117 = vsyncpa [#allocation3], 1
    %118 = vsyncpa [#allocation4], 1

</llo_original>
